<compile_context>
chip_gen: v5e
topology: v5e:2x2
jax: 0.10.0
libtpu: 0.0.40
codegen_flags: <defaults>
</compile_context>

<pallas_src>
import functools

import jax
import jax.numpy as jnp
from jax.experimental import pallas as pl
from jax.experimental.pallas import tpu as pltpu

_LANE = 128   # vreg lane width -> padded hidden width
_SUB = 16     # bf16 sublane packing granularity (row / slab-slice alignment)


def _round_up(a, b):
    return (a + b - 1) // b * b


def dqn_mlp_kernel(x_ref, w_ref, b_ref, o_ref, *, d_pad, lane, num_actions):
    """One batch tile of the 3-layer MLP.

    x_ref: (tile_n, d_pad) bf16              -- current batch tile (pre-cast)
    w_ref: (d_pad + 2*lane, lane) bf16 slab  -- [w1; w2; w3], resident in VMEM
    b_ref: (3, lane) f32 slab                -- [b1; b2; b3], resident in VMEM
    o_ref: (tile_n, num_actions) f32         -- narrow Q-value output
    """
    # Static, 16-row-aligned slices of the resident weight slab (views).
    w1 = w_ref[0:d_pad, :]
    w2 = w_ref[d_pad:d_pad + lane, :]
    w3 = w_ref[d_pad + lane:d_pad + 2 * lane, :]
    b1 = b_ref[0:1, :]
    b2 = b_ref[1:2, :]
    b3 = b_ref[2:3, :]

    # bf16 matmul inputs, f32 MXU accumulation; bias-add / ReLU in f32, then an
    # immediate bf16 downcast so spilled intermediates are half-width.
    x = x_ref[...]  # already bf16
    h1 = jnp.maximum(
        jnp.dot(x, w1, preferred_element_type=jnp.float32) + b1, 0.0
    ).astype(jnp.bfloat16)
    h2 = jnp.maximum(
        jnp.dot(h1, w2, preferred_element_type=jnp.float32) + b2, 0.0
    ).astype(jnp.bfloat16)
    q = jnp.dot(h2, w3, preferred_element_type=jnp.float32) + b3
    # Narrow masked store: only num_actions real lanes go back to HBM.
    o_ref[...] = q[:, :num_actions]


def _pack_params(params, d_pad, lane=_LANE):
    """Pack the 6 parameter tensors into one bf16 weight slab + one f32 bias slab.

    Zero padding is semantically inert: padded hidden lanes are relu(0+0)=0 and
    padded w2/w3 rows are zero.
    """
    w1, b1 = params["w1"], params["b1"]
    w2, b2 = params["w2"], params["b2"]
    w3, b3 = params["w3"], params["b3"]
    d, h = w1.shape
    a = w3.shape[1]

    w_slab = jnp.zeros((d_pad + 2 * lane, lane), jnp.float32)
    w_slab = w_slab.at[:d, :h].set(w1)
    w_slab = w_slab.at[d_pad:d_pad + h, :h].set(w2)
    w_slab = w_slab.at[d_pad + lane:d_pad + lane + h, :a].set(w3)

    b_slab = jnp.zeros((3, lane), jnp.float32)
    b_slab = b_slab.at[0, :h].set(b1.reshape(-1))
    b_slab = b_slab.at[1, :h].set(b2.reshape(-1))
    b_slab = b_slab.at[2, :a].set(b3.reshape(-1))
    return w_slab.astype(jnp.bfloat16), b_slab


def dqn_lander_forward(x, params, *, max_tile_n=4096):
    """x: (N, input_shape) f32.  params: dict of (in,out) weights and (1,out) biases.

    max_tile_n guidance: v5e ~2048, v6e ~4096, v7x ~8192 (raise vmem_limit_bytes
    below if you go past 4096).
    """
    n, d = x.shape
    num_actions = params["w3"].shape[1]
    lane = _LANE
    d_pad = _round_up(d, _SUB)

    # Tile selection:
    #  * multiple of 16 rows (bf16 sublane packing),
    #  * >= 2 grid steps when the batch allows it so ("parallel",) can shard
    #    across v7x's two TensorCores,
    #  * capped at max_tile_n (amortizes the ~0.35 us per-step overhead).
    tile_n = max(_SUB, min(max_tile_n, _round_up((n + 1) // 2, _SUB)))
    n_pad = _round_up(n, tile_n)
    grid = (n_pad // tile_n,)

    # Single fused pad+cast of x: columns d -> d_pad, rows n -> n_pad, bf16.
    # (No separate full-precision padded copy; half the input DMA bytes.)
    x_p = jnp.pad(x, ((0, n_pad - n), (0, d_pad - d))).astype(jnp.bfloat16)

    # NOTE: in a real training loop, pack the parameter slabs once and reuse.
    w_slab, b_slab = _pack_params(params, d_pad, lane)

    flops = 2 * n_pad * (d_pad * lane + lane * lane + lane * lane)
    bytes_accessed = (x_p.size * 2 + w_slab.size * 2 + b_slab.size * 4
                      + n_pad * num_actions * 4)

    q_pad = pl.pallas_call(
        functools.partial(dqn_mlp_kernel, d_pad=d_pad, lane=lane,
                          num_actions=num_actions),
        out_shape=jax.ShapeDtypeStruct((n_pad, num_actions), jnp.float32),
        grid=grid,
        in_specs=[
            pl.BlockSpec((tile_n, d_pad), lambda i: (i, 0)),   # batch tile (pipelined)
            pl.BlockSpec(w_slab.shape, lambda i: (0, 0)),      # resident weight slab
            pl.BlockSpec(b_slab.shape, lambda i: (0, 0)),      # resident bias slab
        ],
        out_specs=pl.BlockSpec((tile_n, num_actions), lambda i: (i, 0)),
        compiler_params=pltpu.CompilerParams(
            dimension_semantics=("parallel",),                 # v7x: 2 TCs split batch
            vmem_limit_bytes=32 * 1024 * 1024),                # headroom on v5e
        cost_estimate=pl.CostEstimate(
            flops=flops, transcendentals=0, bytes_accessed=bytes_accessed),
    )(x_p, w_slab, b_slab)

    return q_pad[:n, :]


def init_params(key, input_shape, num_actions, hidden=64):
    """Deterministic synthetic parameters (same shapes as the PyTorch module)."""
    ks = jax.random.split(key, 6)

    def linear(kw, kb, fan_in, fan_out):
        # PyTorch nn.Linear default init: U(-1/sqrt(fan_in), 1/sqrt(fan_in))
        bound = 1.0 / jnp.sqrt(fan_in)
        w = jax.random.uniform(kw, (fan_in, fan_out), jnp.float32, -bound, bound)
        b = jax.random.uniform(kb, (1, fan_out), jnp.float32, -bound, bound)
        return w, b

    w1, b1 = linear(ks[0], ks[1], input_shape, hidden)
    w2, b2 = linear(ks[2], ks[3], hidden, hidden)
    w3, b3 = linear(ks[4], ks[5], hidden, num_actions)
    return {"w1": w1, "b1": b1, "w2": w2, "b2": b2, "w3": w3, "b3": b3}


def reference_forward_f32(x, p):
    h1 = jnp.maximum(x @ p["w1"] + p["b1"], 0.0)
    h2 = jnp.maximum(h1 @ p["w2"] + p["b2"], 0.0)
    return h2 @ p["w3"] + p["b3"]


def reference_forward_bf16(x, p):
    # Emulates the kernel's numerics: bf16 matmul inputs, f32 accumulation,
    # f32 bias-add / ReLU.
    mm = lambda a, w: jnp.dot(a.astype(jnp.bfloat16), w.astype(jnp.bfloat16),
                              preferred_element_type=jnp.float32)
    h1 = jnp.maximum(mm(x, p["w1"]) + p["b1"], 0.0)
    h2 = jnp.maximum(mm(h1, p["w2"]) + p["b2"], 0.0)
    return mm(h2, p["w3"]) + p["b3"]


if __name__ == "__main__":
    # LunarLander-ish shapes: state dim 8, 4 discrete actions, batch of 8.
    batch, input_shape, num_actions = 8, 8, 4

    key = jax.random.PRNGKey(0)
    kx, kp = jax.random.split(key)
    x = jax.random.normal(kx, (batch, input_shape), dtype=jnp.float32)
    params = init_params(kp, input_shape, num_actions)

    q = dqn_lander_forward(x, params)
    jax.block_until_ready(q)

    q_ref_bf16 = reference_forward_bf16(x, params)
    q_ref_f32 = reference_forward_f32(x, params)
    assert q.shape == (batch, num_actions)
    # Tight against the bf16-emulating reference (same numerics as the kernel).
    assert jnp.allclose(q, q_ref_bf16, atol=1e-2, rtol=1e-2)
    # Loose against the pure-f32 reference (bf16 matmul-input precision).
    assert jnp.allclose(q, q_ref_f32, atol=5e-2, rtol=5e-2)

    print("KERNEL_OK")
</pallas_src>

<mosaic_0001>
module attributes {stable_mosaic.version = 11 : i64} {
  func.func @dqn_mlp_kernel(%arg0: i32, %arg1: memref<16x16xbf16, #tpu.memory_space<vmem>>, %arg2: memref<272x128xbf16, #tpu.memory_space<vmem>>, %arg3: memref<3x128xf32, #tpu.memory_space<vmem>>, %arg4: memref<16x4xf32, #tpu.memory_space<vmem>>) attributes {dimension_semantics = [#tpu.dimension_semantics<parallel>], iteration_bounds = array<i64: 1>, scalar_prefetch = 0 : i64, scratch_operands = 0 : i64, tpu.core_type = #tpu.core_type<tc>, window_params = [{transform_indices = @transform_0, window_bounds = array<i64: 16, 16>}, {pipeline_mode = #tpu.pipeline_mode<synchronous>, transform_indices = @transform_1, window_bounds = array<i64: 272, 128>}, {pipeline_mode = #tpu.pipeline_mode<synchronous>, transform_indices = @transform_2, window_bounds = array<i64: 3, 128>}, {transform_indices = @transform_3, window_bounds = array<i64: 16, 4>}]} {
    %c0 = arith.constant 0 : index
    %c0_0 = arith.constant 0 : index
    %0 = vector.load %arg2[%c0, %c0_0] : memref<272x128xbf16, #tpu.memory_space<vmem>>, vector<16x128xbf16>
    %c16 = arith.constant 16 : index
    %c0_1 = arith.constant 0 : index
    %1 = vector.load %arg2[%c16, %c0_1] : memref<272x128xbf16, #tpu.memory_space<vmem>>, vector<128x128xbf16>
    %c144 = arith.constant 144 : index
    %c0_2 = arith.constant 0 : index
    %2 = vector.load %arg2[%c144, %c0_2] : memref<272x128xbf16, #tpu.memory_space<vmem>>, vector<128x128xbf16>
    %c0_3 = arith.constant 0 : index
    %c0_4 = arith.constant 0 : index
    %3 = vector.load %arg3[%c0_3, %c0_4] : memref<3x128xf32, #tpu.memory_space<vmem>>, vector<1x128xf32>
    %c1 = arith.constant 1 : index
    %c0_5 = arith.constant 0 : index
    %4 = vector.load %arg3[%c1, %c0_5] : memref<3x128xf32, #tpu.memory_space<vmem>>, vector<1x128xf32>
    %c2 = arith.constant 2 : index
    %c0_6 = arith.constant 0 : index
    %5 = vector.load %arg3[%c2, %c0_6] : memref<3x128xf32, #tpu.memory_space<vmem>>, vector<1x128xf32>
    %c0_7 = arith.constant 0 : index
    %c0_8 = arith.constant 0 : index
    %6 = vector.load %arg1[%c0_7, %c0_8] : memref<16x16xbf16, #tpu.memory_space<vmem>>, vector<16x16xbf16>
    %cst = arith.constant dense<0.000000e+00> : vector<16x128xf32>
    %7 = tpu.matmul %6, %0, %cst {dimension_numbers = #tpu.dot_dimension_numbers<[1], [0], [0], [1], [0, 0, 1, 1], [], []>} : vector<16x16xbf16>, vector<16x128xbf16>, vector<16x128xf32> -> vector<16x128xf32>
    %8 = vector.broadcast %3 : vector<1x128xf32> to vector<16x128xf32>
    %9 = arith.addf %7, %8 : vector<16x128xf32>
    %cst_9 = arith.constant 0.000000e+00 : f32
    %10 = vector.broadcast %cst_9 : f32 to vector<16x128xf32>
    %11 = arith.maximumf %9, %10 : vector<16x128xf32>
    %12 = arith.truncf %11 : vector<16x128xf32> to vector<16x128xbf16>
    %cst_10 = arith.constant dense<0.000000e+00> : vector<16x128xf32>
    %13 = tpu.matmul %12, %1, %cst_10 {dimension_numbers = #tpu.dot_dimension_numbers<[1], [0], [0], [1], [0, 0, 1, 1], [], []>} : vector<16x128xbf16>, vector<128x128xbf16>, vector<16x128xf32> -> vector<16x128xf32>
    %14 = vector.broadcast %4 : vector<1x128xf32> to vector<16x128xf32>
    %15 = arith.addf %13, %14 : vector<16x128xf32>
    %cst_11 = arith.constant 0.000000e+00 : f32
    %16 = vector.broadcast %cst_11 : f32 to vector<16x128xf32>
    %17 = arith.maximumf %15, %16 : vector<16x128xf32>
    %18 = arith.truncf %17 : vector<16x128xf32> to vector<16x128xbf16>
    %cst_12 = arith.constant dense<0.000000e+00> : vector<16x128xf32>
    %19 = tpu.matmul %18, %2, %cst_12 {dimension_numbers = #tpu.dot_dimension_numbers<[1], [0], [0], [1], [0, 0, 1, 1], [], []>} : vector<16x128xbf16>, vector<128x128xbf16>, vector<16x128xf32> -> vector<16x128xf32>
    %20 = vector.broadcast %5 : vector<1x128xf32> to vector<16x128xf32>
    %21 = arith.addf %19, %20 : vector<16x128xf32>
    %22 = vector.extract_strided_slice %21 {offsets = [0, 0], sizes = [16, 4], strides = [1, 1]} : vector<16x128xf32> to vector<16x4xf32>
    %c0_13 = arith.constant 0 : index
    %c0_14 = arith.constant 0 : index
    %23 = vector.load %arg4[%c0_13, %c0_14] : memref<16x4xf32, #tpu.memory_space<vmem>>, vector<16x4xf32>
    tpu.vector_store %arg4[%c0_13, %c0_14], %22 {strides = array<i32>} : memref<16x4xf32, #tpu.memory_space<vmem>>, vector<16x4xf32>,
    return
  }
  func.func @transform_0(%arg0: i32) -> (i32, i32) {
    %c0_i32 = arith.constant 0 : i32
    %c0_i32_0 = arith.constant 0 : i32
    return %arg0, %c0_i32 : i32, i32
  }
  func.func @transform_1(%arg0: i32) -> (i32, i32) {
    %c0_i32 = arith.constant 0 : i32
    %c0_i32_0 = arith.constant 0 : i32
    %c0_i32_1 = arith.constant 0 : i32
    return %c0_i32, %c0_i32_0 : i32, i32
  }
  func.func @transform_2(%arg0: i32) -> (i32, i32) {
    %c0_i32 = arith.constant 0 : i32
    %c0_i32_0 = arith.constant 0 : i32
    %c0_i32_1 = arith.constant 0 : i32
    return %c0_i32, %c0_i32_0 : i32, i32
  }
  func.func @transform_3(%arg0: i32) -> (i32, i32) {
    %c0_i32 = arith.constant 0 : i32
    %c0_i32_0 = arith.constant 0 : i32
    return %arg0, %c0_i32 : i32, i32
  }
}

</mosaic_0001>

<llo_original>
// kernel: tpu_custom_call.1
$region0: #{tpu_custom_call.1}
  #allocation0 [shape = 'u32[]', space=smem, size = 0x4, offset = 0x4, fixed_abs, tag = 'smem constant byte address 0x4 - core index']
  #allocation1 [shape = 'u32[72,128]{1,0:T(1,128)}', space=vmem, size = 0x9000, scoped, tag = 'internal scratch']
  %s0 = inlined_call_operand.hbm [shape: bf16[16,16], index: 0, kind: input, shape index: {}]
  %s1 = inlined_call_operand.hbm [shape: bf16[272,128], index: 1, kind: input, shape index: {}]
  %s2 = inlined_call_operand.hbm [shape: f32[3,128], index: 2, kind: input, shape index: {}]
  %s3 = inlined_call_operand.vmem [shape: f32[16,4], index: 3, kind: output, shape index: {}]
  %s4 = sld [smem:[#allocation0]]
  $region34: #{tpu_custom_call.1} parent=0
    _
  %s6 = ssub.s32 1, %s4
  %s7 = scalar_select 0, %s6, %s4
  $region1: #{tpu_custom_call.1} parent=0
    #allocation2 [shape = 'u8[4096]{0}', space=vmem, size = 0x1000, scoped, tag = 'input window, operand 0, single buffered']
    #allocation3 [shape = 's32[1]{0}', space=sflag, size = 0x4, scoped, tag = 'scoped memory for tpu_custom_call.1']
    #allocation4 [shape = 'u8[69632]{0}', space=vmem, size = 0x11000, scoped, tag = 'input window, operand 1, single buffered']
    #allocation5 [shape = 's32[1]{0}', space=sflag, size = 0x4, scoped, tag = 'scoped memory for tpu_custom_call.1']
    #allocation6 [shape = 'u8[2048]{0}', space=vmem, size = 0x800, scoped, tag = 'input window, operand 2, single buffered']
    %8 = vsyncpa [#allocation3], 0
    %9 = vsyncpa [#allocation5], 0
    // Predicated region
    $region2: #{tpu_custom_call.1} parent=1 // pred_check
      _
    $region3: #{tpu_custom_call.1} parent=1 // pred_check_branch
      %11 = sbr.rel (0) target = $region5
    $region4: #{tpu_custom_call.1} parent=1 // pred_region
      %13 = vsyncadd [#allocation3], 0
      %s14 = sshll.u32 %s0, 4
      %s15 = int_to_ptr.hbm [resolvable:$true] %s14
      %s16 = sshll.u32 [#allocation2], 4
      %s17 = int_to_ptr.vmem [resolvable:$true] %s16
      %22 = dma.hbm_to_vmem [thread:$0]  %s15, 128, %s17, [#allocation3], 64, 64, 4
    $region5: #{tpu_custom_call.1} parent=1 // pred_fallthru
      _
    // Predicated region
    $region6: #{tpu_custom_call.1} parent=1 // pred_check
      _
    $region7: #{tpu_custom_call.1} parent=1 // pred_check_branch
      %24 = sbr.rel (0) target = $region9
    $region8: #{tpu_custom_call.1} parent=1 // pred_region
      %26 = vsyncadd [#allocation5], 0
      %s27 = sshll.u32 %s1, 4
      %s28 = int_to_ptr.hbm [resolvable:$true] %s27
      %s29 = sshll.u32 [#allocation4], 4
      %s30 = int_to_ptr.vmem [resolvable:$true] %s29
      %35 = dma.hbm_to_vmem [thread:$0]  %s28, 2176, %s30, [#allocation5], 64, 64, 4
    $region9: #{tpu_custom_call.1} parent=1 // pred_fallthru
      _
    // Predicated region
    $region10: #{tpu_custom_call.1} parent=1 // pred_check
      _
    $region11: #{tpu_custom_call.1} parent=1 // pred_check_branch
      %37 = sbr.rel (0) target = $region13
    $region12: #{tpu_custom_call.1} parent=1 // pred_region
      %39 = vsyncadd [#allocation5], 0
      %s41 = sshll.u32 %s2, 4
      %s42 = int_to_ptr.hbm [resolvable:$true] %s41
      %s43 = sshll.u32 [#allocation6], 4
      %s44 = int_to_ptr.vmem [resolvable:$true] %s43
      %46 = dma.hbm_to_vmem [thread:$0]  %s42, 64, %s44, [#allocation5]
    $region13: #{tpu_custom_call.1} parent=1 // pred_fallthru
      _
    // Predicated region
    $region14: #{tpu_custom_call.1} parent=1 // pred_check
      _
    $region15: #{tpu_custom_call.1} parent=1 // pred_check_branch
      %48 = sbr.rel (0) target = $region17
    $region16: #{tpu_custom_call.1} parent=1 // pred_region
      %50 = dma.done [#allocation3], 128
    $region17: #{tpu_custom_call.1} parent=1 // pred_fallthru
      _
    // Predicated region
    $region18: #{tpu_custom_call.1} parent=1 // pred_check
      _
    $region19: #{tpu_custom_call.1} parent=1 // pred_check_branch
      %52 = sbr.rel (0) target = $region21
    $region20: #{tpu_custom_call.1} parent=1 // pred_region
      %54 = dma.done [#allocation5], 2176
    $region21: #{tpu_custom_call.1} parent=1 // pred_fallthru
      _
    // Predicated region
    $region22: #{tpu_custom_call.1} parent=1 // pred_check
      _
    $region23: #{tpu_custom_call.1} parent=1 // pred_check_branch
      %56 = sbr.rel (0) target = $region25
    $region24: #{tpu_custom_call.1} parent=1 // pred_region
      %58 = dma.done [#allocation5], 64
    $region25: #{tpu_custom_call.1} parent=1 // pred_fallthru
      _
    %v60 = vld [vmem:[#allocation4] sm:$0xf]
    %v61 = vld [vmem:[#allocation4 + $0x4] sm:$0xf]
    %v62 = vld [vmem:[#allocation4 + $0x8] sm:$0xf]
    %v63 = vld [vmem:[#allocation4 + $0xc] sm:$0xf]
    %v64 = vld [vmem:[#allocation4 + $0x10] sm:$0xf]
    %v65 = vld [vmem:[#allocation4 + $0x14] sm:$0xf]
    %v66 = vld [vmem:[#allocation4 + $0x18] sm:$0xf]
    %v67 = vld [vmem:[#allocation4 + $0x1c] sm:$0xf]
    %v68 = vld [vmem:[#allocation4 + $0x20] sm:$0xf]
    %v69 = vld [vmem:[#allocation4 + $0x24] sm:$0xf]
    %v70 = vld [vmem:[#allocation4 + $0x28] sm:$0xf]
    %v71 = vld [vmem:[#allocation4 + $0x2c] sm:$0xf]
    %v72 = vld [vmem:[#allocation4 + $0x30] sm:$0xf]
    %v73 = vld [vmem:[#allocation4 + $0x34] sm:$0xf]
    %v74 = vld [vmem:[#allocation4 + $0x38] sm:$0xf]
    %v75 = vld [vmem:[#allocation4 + $0x3c] sm:$0xf]
    %v76 = vld [vmem:[#allocation4 + $0x40] sm:$0xf]
    %v77 = vld [vmem:[#allocation4 + $0x44] sm:$0xf]
    %v78 = vld [vmem:[#allocation4 + $0x48] sm:$0xf]
    %v79 = vld [vmem:[#allocation4 + $0x4c] sm:$0xf]
    %v80 = vld [vmem:[#allocation4 + $0x50] sm:$0xf]
    %v81 = vld [vmem:[#allocation4 + $0x54] sm:$0xf]
    %v82 = vld [vmem:[#allocation4 + $0x58] sm:$0xf]
    %v83 = vld [vmem:[#allocation4 + $0x5c] sm:$0xf]
    %v84 = vld [vmem:[#allocation4 + $0x60] sm:$0xf]
    %v85 = vld [vmem:[#allocation4 + $0x64] sm:$0xf]
    %v86 = vld [vmem:[#allocation4 + $0x68] sm:$0xf]
    %v87 = vld [vmem:[#allocation4 + $0x6c] sm:$0xf]
    %v88 = vld [vmem:[#allocation4 + $0x70] sm:$0xf]
    %v89 = vld [vmem:[#allocation4 + $0x74] sm:$0xf]
    %v90 = vld [vmem:[#allocation4 + $0x78] sm:$0xf]
    %v91 = vld [vmem:[#allocation4 + $0x7c] sm:$0xf]
    %v92 = vld [vmem:[#allocation4 + $0x80] sm:$0xf]
    %v93 = vld [vmem:[#allocation4 + $0x84] sm:$0xf]
    %v94 = vld [vmem:[#allocation6] sm:$0x1]
    %v95 = vld [vmem:[#allocation6 + $0x1] sm:$0x1]
    %v96 = vld [vmem:[#allocation6 + $0x2] sm:$0x1]
    %v97 = vld [vmem:[#allocation2] sm:$0xf]
    %v98 = vld [vmem:[#allocation2 + $0x4] sm:$0xf]
    %v99 = vperm.slane %v94, 0
    %v102 = vunpack.c.l.b16 %v97
    %v103 = vunpack.c.l.b16 %v98
    %v104 = vpack.c.b16 %v103, %v102
    %v107 = vunpack.c.l.b16 %v60
    %v108 = vunpack.c.l.b16 %v61
    %v109 = vpack.c.b16 %v108, %v107
    %vm111 = vcmask 130048
    %v113 = vsel %vm111, %v104, 0
    %115 = vmatpush.bf16.msra.mxu0 0
    %116 = vmatpush.bf16.msra.mxu0 0
    %117 = vmatpush.bf16.msra.mxu0 0
    %118 = vmatpush.bf16.msra.mxu0 0
    %119 = vmatpush.bf16.msra.mxu0 0
    %120 = vmatpush.bf16.msra.mxu0 0
    %121 = vmatpush.bf16.msra.mxu0 0
    %122 = vmatpush.bf16.msra.mxu0 %v109
    %123 = vmatmul.bf16.gmra.mxu0 %v113
    %v124 = vpop.f32.mrf.mxu0
    %v125 = vadd.f32 %v99, %v124
    %v126 = vpop.f32.mrf.mxu0
    %v127 = vadd.f32 %v99, %v126
    %128 = vdwg.mxu0
    %v129 = vmax.f32 %v125, 0.0
    %v130 = vmax.f32 %v127, 0.0
    %v131 = vpack.c.bf16 %v130, %v129
    %v132 = vperm.slane %v95, 0
    %v149 = vunpack.c.l.b16 %v62
    %v150 = vunpack.c.l.b16 %v63
    %v151 = vunpack.c.l.b16 %v64
    %v152 = vunpack.c.l.b16 %v65
    %v153 = vunpack.c.l.b16 %v66
    %v154 = vunpack.c.l.b16 %v67
    %v155 = vunpack.c.l.b16 %v68
    %v156 = vunpack.c.l.b16 %v69
    %v157 = vunpack.c.l.b16 %v70
    %v158 = vunpack.c.l.b16 %v71
    %v159 = vunpack.c.l.b16 %v72
    %v160 = vunpack.c.l.b16 %v73
    %v161 = vunpack.c.l.b16 %v74
    %v162 = vunpack.c.l.b16 %v75
    %v163 = vunpack.c.l.b16 %v76
    %v164 = vunpack.c.l.b16 %v77
    %v165 = vpack.c.b16 %v150, %v149
    %v166 = vpack.c.b16 %v152, %v151
    %v167 = vpack.c.b16 %v154, %v153
    %v168 = vpack.c.b16 %v156, %v155
    %v169 = vpack.c.b16 %v158, %v157
    %v170 = vpack.c.b16 %v160, %v159
    %v171 = vpack.c.b16 %v162, %v161
    %v172 = vpack.c.b16 %v164, %v163
    %181 = vmatpush.bf16.msra.mxu0 %v172
    %182 = vmatpush.bf16.msra.mxu0 %v171
    %183 = vmatpush.bf16.msra.mxu0 %v170
    %184 = vmatpush.bf16.msra.mxu0 %v169
    %185 = vmatpush.bf16.msra.mxu0 %v168
    %186 = vmatpush.bf16.msra.mxu0 %v167
    %187 = vmatpush.bf16.msra.mxu0 %v166
    %188 = vmatpush.bf16.msra.mxu0 %v165
    %189 = vmatmul.bf16.gmra.mxu0 %v131
    %v190 = vpop.f32.mrf.mxu0
    %v191 = vadd.f32 %v132, %v190
    %v192 = vpop.f32.mrf.mxu0
    %v193 = vadd.f32 %v132, %v192
    %194 = vdwg.mxu0
    %v195 = vmax.f32 %v191, 0.0
    %v196 = vmax.f32 %v193, 0.0
    %v197 = vpack.c.bf16 %v196, %v195
    %v198 = vperm.slane %v96, 0
    %v215 = vunpack.c.l.b16 %v78
    %v216 = vunpack.c.l.b16 %v79
    %v217 = vunpack.c.l.b16 %v80
    %v218 = vunpack.c.l.b16 %v81
    %v219 = vunpack.c.l.b16 %v82
    %v220 = vunpack.c.l.b16 %v83
    %v221 = vunpack.c.l.b16 %v84
    %v222 = vunpack.c.l.b16 %v85
    %v223 = vunpack.c.l.b16 %v86
    %v224 = vunpack.c.l.b16 %v87
    %v225 = vunpack.c.l.b16 %v88
    %v226 = vunpack.c.l.b16 %v89
    %v227 = vunpack.c.l.b16 %v90
    %v228 = vunpack.c.l.b16 %v91
    %v229 = vunpack.c.l.b16 %v92
    %v230 = vunpack.c.l.b16 %v93
    %v231 = vpack.c.b16 %v216, %v215
    %v232 = vpack.c.b16 %v218, %v217
    %v233 = vpack.c.b16 %v220, %v219
    %v234 = vpack.c.b16 %v222, %v221
    %v235 = vpack.c.b16 %v224, %v223
    %v236 = vpack.c.b16 %v226, %v225
    %v237 = vpack.c.b16 %v228, %v227
    %v238 = vpack.c.b16 %v230, %v229
    %247 = vmatpush.bf16.msra.mxu0 %v238
    %248 = vmatpush.bf16.msra.mxu0 %v237
    %249 = vmatpush.bf16.msra.mxu0 %v236
    %250 = vmatpush.bf16.msra.mxu0 %v235
    %251 = vmatpush.bf16.msra.mxu0 %v234
    %252 = vmatpush.bf16.msra.mxu0 %v233
    %253 = vmatpush.bf16.msra.mxu0 %v232
    %254 = vmatpush.bf16.msra.mxu0 %v231
    %255 = vmatmul.bf16.gmra.mxu0 %v197
    %v256 = vpop.f32.mrf.mxu0
    %v257 = vadd.f32 %v198, %v256
    %v258 = vpop.f32.mrf.mxu0
    %v259 = vadd.f32 %v198, %v258
    %260 = vdwg.mxu0
    %vm261 = vcmask 31744
    %262 = vst.msk [vmem:[%s3] sm:$0xff] %vm261, %v257
    %263 = vst.msk [vmem:[%s3 + $0x8] sm:$0xff] %vm261, %v259
    // Predicated region
    $region26: #{tpu_custom_call.1} parent=1 // pred_check
      _
    $region27: #{tpu_custom_call.1} parent=1 // pred_check_branch
      %265 = sbr.rel (0) target = $region29
    $region28: #{tpu_custom_call.1} parent=1 // pred_region
      _
    $region29: #{tpu_custom_call.1} parent=1 // pred_fallthru
      _
    // Predicated region
    $region30: #{tpu_custom_call.1} parent=1 // pred_check
      _
    $region31: #{tpu_custom_call.1} parent=1 // pred_check_branch
      %267 = sbr.rel (0) target = $region33
    $region32: #{tpu_custom_call.1} parent=1 // pred_region
      _
    $region33: #{tpu_custom_call.1} parent=1 // pred_fallthru
      _
    %268 = vsyncpa [#allocation3], 1
    %269 = vsyncpa [#allocation5], 1

</llo_original>
